<compile_context>
chip_gen: v7x
topology: tpu7x:2x2x1
jax: 0.10.0
libtpu: 0.0.40
codegen_flags: <defaults>
</compile_context>

<pallas_src>
import functools

import jax
import jax.numpy as jnp
from jax.experimental import pallas as pl
from jax.experimental.pallas import tpu as pltpu


def _vmem_limit_bytes():
    """Per-generation VMEM budget: ~3/4 of physical capacity, capped.

    v5e/v6e have 128 MiB VMEM per TensorCore, v7x only 64 MiB; fall back to the
    conservative 64 MiB figure if the query is unavailable.
    """
    try:
        cap = int(pltpu.get_tpu_info().vmem_capacity_bytes)
    except Exception:
        cap = 64 * 1024 * 1024
    return int(min(cap * 3 // 4, 96 * 1024 * 1024))


def _lq_candidates(Lq):
    """Lq tile candidates, largest / most MXU-aligned first (256-, then 128-aligned)."""
    if Lq % 8 == 0:
        cands = [t for t in range(8, min(Lq, 512) + 1, 8) if Lq % t == 0]
    else:
        cands = [Lq]
    if not cands:
        cands = [Lq]
    return sorted(set(cands), key=lambda t: (t % 256 == 0, t % 128 == 0, t), reverse=True)


def _ensure_two_steps(B, Lq, Bt, Lq_t, lq_cands):
    """Keep >= 2 grid steps along a 'parallel' axis so a 2-TC part (v7x) is not half idle."""
    if (B // Bt) * (Lq // Lq_t) >= 2:
        return Bt, Lq_t
    smaller = [t for t in lq_cands if t < Lq_t]
    if smaller:                       # prefer splitting Lq (keeps lane-dense-output gating)
        return Bt, max(smaller)
    if B >= 2:                        # otherwise split the batch axis
        for bt in range(B // 2, 0, -1):
            if B % bt == 0:
                return bt, Lq_t
    return Bt, Lq_t


def _choose_tiles(B, Lq, Lc, D, budget_bytes, in_item, out_item, attn_item):
    """Pick (Bt, Lq_t): large Lq tiles first (fills MXU M dim, amortizes ~0.35us/step),
    then a modest batch block (Bt <= 4), subject to the per-step VMEM working set."""
    lq_cands = _lq_candidates(Lq)
    b_cands = sorted({d for d in range(1, min(B, 4) + 1) if B % d == 0}, reverse=True)
    w_item = in_item  # weight halves are stored in the MXU dtype

    def step_bytes(bt, lqt):
        io_in = 2 * in_item * (bt * lqt * D + bt * Lc * D)               # q + ctx (dbl-buf)
        io_out = 2 * (out_item * bt * lqt * D + attn_item * bt * lqt * Lc)
        wts = 2 * w_item * 3 * D * D
        live = 4 * (3 * bt * lqt * Lc + 4 * bt * lqt * D)                # f32 temps
        return io_in + io_out + wts + live

    for lqt in lq_cands:
        for bt in b_cands:
            if step_bytes(bt, lqt) <= budget_bytes:
                return _ensure_two_steps(B, Lq, bt, lqt, lq_cands)
    # Nothing fits: smallest tile.  TODO(synk): flash-style Lc grid axis is the real fix.
    return 1, min(lq_cands)


def _attn_body(q, ctx, w_mix_t, w_qry_t, out_ref, attn_ref, mxu_dtype, flat_out):
    """Shared hot path: scores -> softmax -> mix -> linear_out -> tanh.

    q:   (Bt, Lq_t, D)  (already projected for 'general'; mxu_dtype or f32)
    ctx: (Bt, Lc,  D)   mxu_dtype (cast wrapper-side)
    w_mix_t / w_qry_t: (D, D) in mxu_dtype, pre-transposed halves of W_out.
    """
    bt, lqt, d = q.shape
    q_m = q.astype(mxu_dtype)       # no-op when already mxu_dtype
    c_m = ctx.astype(mxu_dtype)

    # scores[b, i, j] = <q[b, i, :], ctx[b, j, :]> -- trans-B contraction, no ctx.T materialized.
    scores = jnp.einsum("bqd,bkd->bqk", q_m, c_m, preferred_element_type=jnp.float32)

    # numerically-stable softmax over the context (last) axis; exact normalization so the
    # returned weights sum to 1 (the per-row reciprocal is a tiny (Bt, Lq_t, 1) op).
    m = jnp.max(scores, axis=-1, keepdims=True)
    e = jnp.exp(scores - m)
    inv = 1.0 / jnp.sum(e, axis=-1, keepdims=True)
    weights = e * inv

    # mix: (Bt, Lq_t, Lc) x (Bt, Lc, D) -> (Bt, Lq_t, D)   [MXU]
    mix = jnp.einsum("bqk,bkd->bqd", weights.astype(mxu_dtype), c_m,
                     preferred_element_type=jnp.float32)

    # linear_out(concat([mix, q])) == mix @ W_out[:, :D].T + q @ W_out[:, D:].T
    # Weight halves are pre-split/pre-transposed wrapper-side; fold batch into M to fill the MXU.
    mix2 = mix.reshape(bt * lqt, d).astype(mxu_dtype)
    q2 = q_m.reshape(bt * lqt, d)
    lin = (jnp.dot(mix2, w_mix_t, preferred_element_type=jnp.float32)
           + jnp.dot(q2, w_qry_t, preferred_element_type=jnp.float32))
    out = jnp.tanh(lin)

    if flat_out:
        # lane-dense store: (Bt, Lq_t*D) block of a [B, Lq*D] output (unmasked vst for D < 128).
        out_ref[...] = out.reshape(bt, lqt * d).astype(out_ref.dtype)
    else:
        out_ref[...] = out.reshape(bt, lqt, d).astype(out_ref.dtype)
    attn_ref[...] = weights.astype(attn_ref.dtype)


def _attention_dot_kernel(q_ref, c_ref, wmix_ref, wqry_ref, out_ref, attn_ref, *,
                          mxu_dtype, flat_out):
    _attn_body(q_ref[...], c_ref[...], wmix_ref[...], wqry_ref[...],
               out_ref, attn_ref, mxu_dtype, flat_out)


def _attention_general_kernel(q_ref, c_ref, win_ref, wmix_ref, wqry_ref,
                              out_ref, attn_ref, *, mxu_dtype, flat_out):
    bt, lqt, d = q_ref.shape
    # linear_in (no bias): q = q_raw @ W_in.T   (win_ref already holds W_in.T, mxu_dtype)
    q2 = q_ref[...].reshape(bt * lqt, d).astype(mxu_dtype)
    q = jnp.dot(q2, win_ref[...], preferred_element_type=jnp.float32).reshape(bt, lqt, d)
    _attn_body(q, c_ref[...], wmix_ref[...], wqry_ref[...], out_ref, attn_ref,
               mxu_dtype, flat_out)


@functools.partial(jax.jit, static_argnames=("attention_type", "mxu_dtype", "weights_dtype"))
def attention_forward(query, context, w_out, w_in=None, *, attention_type="dot",
                      mxu_dtype=jnp.bfloat16, weights_dtype=None):
    """Pallas-backed forward of the `Attention` module.

    query:   [B, Lq, D]
    context: [B, Lc, D]
    w_out:   [D, 2*D]   (torch nn.Linear(2D, D, bias=False).weight)
    w_in:    [D, D]     (only for attention_type == 'general')
    returns: (output [B, Lq, D], weights [B, Lq, Lc])
    """
    B, Lq, D = query.shape
    Lc = context.shape[1]
    out_dtype = query.dtype
    attn_dtype = out_dtype if weights_dtype is None else weights_dtype

    vmem_limit = _vmem_limit_bytes()
    in_item = jnp.dtype(mxu_dtype).itemsize
    Bt, Lq_t = _choose_tiles(
        B, Lq, Lc, D, budget_bytes=int(vmem_limit * 0.85),
        in_item=in_item, out_item=jnp.dtype(out_dtype).itemsize,
        attn_item=jnp.dtype(attn_dtype).itemsize)
    grid = (B // Bt, Lq // Lq_t)

    # Lane-dense main output only when the (8,128) block constraints allow it.
    flat_out = ((D % 128 != 0)
                and ((Lq_t * D) % 128 == 0 or Lq_t == Lq)
                and (Bt % 8 == 0 or Bt == B))

    # Wrapper-side layout/dtype plumbing (free): inputs DMA'd in the MXU dtype; W_out split
    # and transposed so the kernel never slices at a non-128-aligned lane offset nor
    # transposes on the XLU.
    q_in = query.astype(mxu_dtype)
    c_in = context.astype(mxu_dtype)
    w_mix_t = w_out[:, :D].T.astype(mxu_dtype)   # (D, D)
    w_qry_t = w_out[:, D:].T.astype(mxu_dtype)   # (D, D)

    q_spec = pl.BlockSpec((Bt, Lq_t, D), lambda b, i: (b, i, 0))
    c_spec = pl.BlockSpec((Bt, Lc, D), lambda b, i: (b, 0, 0))   # fetched once per batch block
    w_spec = pl.BlockSpec((D, D), lambda b, i: (0, 0))           # constant block -> fetched once
    attn_spec = pl.BlockSpec((Bt, Lq_t, Lc), lambda b, i: (b, i, 0))
    if flat_out:
        out0_spec = pl.BlockSpec((Bt, Lq_t * D), lambda b, i: (b, i))
        out0_shape = jax.ShapeDtypeStruct((B, Lq * D), out_dtype)
    else:
        out0_spec = pl.BlockSpec((Bt, Lq_t, D), lambda b, i: (b, i, 0))
        out0_shape = jax.ShapeDtypeStruct((B, Lq, D), out_dtype)

    out_specs = (out0_spec, attn_spec)
    out_shape = (out0_shape, jax.ShapeDtypeStruct((B, Lq, Lc), attn_dtype))
    compiler_params = pltpu.CompilerParams(
        dimension_semantics=("parallel", "parallel"),
        vmem_limit_bytes=vmem_limit,
    )

    if attention_type == "general":
        if w_in is None:
            raise ValueError("w_in is required for attention_type='general'.")
        w_in_t = w_in.T.astype(mxu_dtype)
        kernel = functools.partial(_attention_general_kernel, mxu_dtype=mxu_dtype,
                                   flat_out=flat_out)
        in_specs = [q_spec, c_spec, w_spec, w_spec, w_spec]
        args = (q_in, c_in, w_in_t, w_mix_t, w_qry_t)
    else:  # 'dot'
        kernel = functools.partial(_attention_dot_kernel, mxu_dtype=mxu_dtype,
                                   flat_out=flat_out)
        in_specs = [q_spec, c_spec, w_spec, w_spec]
        args = (q_in, c_in, w_mix_t, w_qry_t)

    out, attn = pl.pallas_call(
        kernel,
        out_shape=out_shape,
        grid_spec=pltpu.PrefetchScalarGridSpec(
            num_scalar_prefetch=0,
            grid=grid,
            in_specs=in_specs,
            out_specs=out_specs,
        ),
        compiler_params=compiler_params,
    )(*args)

    if flat_out:
        out = out.reshape(B, Lq, D)   # pure row-major reshape back to [B, Lq, D]
    return out, attn


def _reference_forward(query, context, w_out, w_in=None, attention_type="dot"):
    """Pure-jnp f32 reference mirroring the torch module, for sanity checking."""
    if attention_type == "general":
        query = jnp.einsum("bld,ed->ble", query, w_in)
    scores = jnp.einsum("bqd,bkd->bqk", query, context)
    weights = jax.nn.softmax(scores, axis=-1)
    mix = jnp.einsum("bqk,bkd->bqd", weights, context)
    combined = jnp.concatenate([mix, query], axis=-1)
    output = jnp.tanh(jnp.einsum("bqe,de->bqd", combined, w_out))
    return output, weights


if __name__ == "__main__":
    B, Lq, Lc, D = 2, 8, 8, 32  # batch, output length, context length, dimensions

    key = jax.random.PRNGKey(0)
    k_q, k_c, k_wout, k_win = jax.random.split(key, 4)
    query = jax.random.normal(k_q, (B, Lq, D), dtype=jnp.float32)
    context = jax.random.normal(k_c, (B, Lc, D), dtype=jnp.float32)
    # Deterministic parameter init (torch Linear default ~ U(-1/sqrt(fan_in), +1/sqrt(fan_in))).
    w_out = jax.random.uniform(k_wout, (D, 2 * D), jnp.float32,
                               minval=-1.0 / jnp.sqrt(2.0 * D), maxval=1.0 / jnp.sqrt(2.0 * D))
    w_in = jax.random.uniform(k_win, (D, D), jnp.float32,
                              minval=-1.0 / jnp.sqrt(1.0 * D), maxval=1.0 / jnp.sqrt(1.0 * D))

    # f32-MXU path: tight algorithmic check against the pure-JAX reference.
    out32, w32 = attention_forward(query, context, w_out,
                                   attention_type="dot", mxu_dtype=jnp.float32)
    outg32, wg32 = attention_forward(query, context, w_out, w_in,
                                     attention_type="general", mxu_dtype=jnp.float32)
    jax.block_until_ready((out32, w32, outg32, wg32))

    # bf16-MXU path (default, MXU-native on v5e/v6e/v7x): looser tolerance (operand rounding).
    out_bf, w_bf = attention_forward(query, context, w_out, attention_type="dot")
    outg_bf, wg_bf = attention_forward(query, context, w_out, w_in, attention_type="general")
    jax.block_until_ready((out_bf, w_bf, outg_bf, wg_bf))

    ref_out, ref_w = _reference_forward(query, context, w_out)
    ref_outg, ref_wg = _reference_forward(query, context, w_out, w_in, "general")

    assert out32.shape == (B, Lq, D) and w32.shape == (B, Lq, Lc)
    assert jnp.allclose(out32, ref_out, atol=5e-3, rtol=5e-3)
    assert jnp.allclose(w32, ref_w, atol=5e-3, rtol=5e-3)
    assert jnp.allclose(outg32, ref_outg, atol=5e-3, rtol=5e-3)
    assert jnp.allclose(wg32, ref_wg, atol=5e-3, rtol=5e-3)

    assert out_bf.shape == (B, Lq, D) and w_bf.shape == (B, Lq, Lc)
    assert jnp.allclose(out_bf, ref_out, atol=1e-1, rtol=1e-1)
    assert jnp.allclose(w_bf, ref_w, atol=1e-1, rtol=1e-1)
    assert jnp.allclose(outg_bf, ref_outg, atol=1e-1, rtol=1e-1)
    assert jnp.allclose(wg_bf, ref_wg, atol=1e-1, rtol=1e-1)

    print("KERNEL_OK")
</pallas_src>

<mosaic_0001>
module attributes {stable_mosaic.version = 11 : i64} {
  func.func @_attention_dot_kernel(%arg0: i32, %arg1: i32, %arg2: memref<1x8x32xf32, #tpu.memory_space<vmem>>, %arg3: memref<1x8x32xf32, #tpu.memory_space<vmem>>, %arg4: memref<32x32xf32, #tpu.memory_space<vmem>>, %arg5: memref<32x32xf32, #tpu.memory_space<vmem>>, %arg6: memref<1x8x32xf32, #tpu.memory_space<vmem>>, %arg7: memref<1x8x8xf32, #tpu.memory_space<vmem>>) attributes {dimension_semantics = [#tpu.dimension_semantics<parallel>, #tpu.dimension_semantics<parallel>], iteration_bounds = array<i64: 2, 1>, scalar_prefetch = 0 : i64, scratch_operands = 0 : i64, tpu.core_type = #tpu.core_type<tc>, window_params = [{transform_indices = @transform_0, window_bounds = array<i64: 1, 8, 32>}, {transform_indices = @transform_1, window_bounds = array<i64: 1, 8, 32>}, {pipeline_mode = #tpu.pipeline_mode<synchronous>, transform_indices = @transform_2, window_bounds = array<i64: 32, 32>}, {pipeline_mode = #tpu.pipeline_mode<synchronous>, transform_indices = @transform_3, window_bounds = array<i64: 32, 32>}, {transform_indices = @transform_4, window_bounds = array<i64: 1, 8, 32>}, {transform_indices = @transform_5, window_bounds = array<i64: 1, 8, 8>}]} {
    %c0 = arith.constant 0 : index
    %c0_0 = arith.constant 0 : index
    %c0_1 = arith.constant 0 : index
    %0 = vector.load %arg2[%c0, %c0_0, %c0_1] : memref<1x8x32xf32, #tpu.memory_space<vmem>>, vector<1x8x32xf32>
    %c0_2 = arith.constant 0 : index
    %c0_3 = arith.constant 0 : index
    %c0_4 = arith.constant 0 : index
    %1 = vector.load %arg3[%c0_2, %c0_3, %c0_4] : memref<1x8x32xf32, #tpu.memory_space<vmem>>, vector<1x8x32xf32>
    %c0_5 = arith.constant 0 : index
    %c0_6 = arith.constant 0 : index
    %2 = vector.load %arg4[%c0_5, %c0_6] : memref<32x32xf32, #tpu.memory_space<vmem>>, vector<32x32xf32>
    %c0_7 = arith.constant 0 : index
    %c0_8 = arith.constant 0 : index
    %3 = vector.load %arg5[%c0_7, %c0_8] : memref<32x32xf32, #tpu.memory_space<vmem>>, vector<32x32xf32>
    "tpu.trace_start"() <{level = 10 : i32, message = "bqd,bkd->bqk"}> : () -> ()
    %cst = arith.constant dense<0.000000e+00> : vector<1x8x8xf32>
    %4 = tpu.matmul %0, %1, %cst {dimension_numbers = #tpu.dot_dimension_numbers<[2], [2], [1], [1], [0, 0, 0, 1, 1, 1], [0], [0]>} : vector<1x8x32xf32>, vector<1x8x32xf32>, vector<1x8x8xf32> -> vector<1x8x8xf32>
    "tpu.trace_stop"() : () -> ()
    %cst_9 = arith.constant dense<0xFF800000> : vector<1x8xf32>
    %5 = vector.multi_reduction <maximumf>, %4, %cst_9 [2] : vector<1x8x8xf32> to vector<1x8xf32>
    %6 = vector.shape_cast %5 : vector<1x8xf32> to vector<1x8x1xf32>
    %7 = vector.broadcast %6 : vector<1x8x1xf32> to vector<1x8x8xf32>
    %8 = arith.subf %4, %7 : vector<1x8x8xf32>
    %9 = math.exp %8 : vector<1x8x8xf32>
    %cst_10 = arith.constant dense<0.000000e+00> : vector<1x8xf32>
    %10 = vector.multi_reduction <add>, %9, %cst_10 [2] : vector<1x8x8xf32> to vector<1x8xf32>
    %11 = vector.shape_cast %10 : vector<1x8xf32> to vector<1x8x1xf32>
    %cst_11 = arith.constant 1.000000e+00 : f32
    %12 = vector.broadcast %cst_11 : f32 to vector<1x8x1xf32>
    %13 = arith.divf %12, %11 : vector<1x8x1xf32>
    %14 = vector.broadcast %13 : vector<1x8x1xf32> to vector<1x8x8xf32>
    %15 = arith.mulf %9, %14 : vector<1x8x8xf32>
    "tpu.trace_start"() <{level = 10 : i32, message = "bqk,bkd->bqd"}> : () -> ()
    %cst_12 = arith.constant dense<0.000000e+00> : vector<1x8x32xf32>
    %16 = tpu.matmul %15, %1, %cst_12 {dimension_numbers = #tpu.dot_dimension_numbers<[2], [1], [1], [2], [0, 0, 0, 1, 1, 2], [0], [0]>} : vector<1x8x8xf32>, vector<1x8x32xf32>, vector<1x8x32xf32> -> vector<1x8x32xf32>
    "tpu.trace_stop"() : () -> ()
    %17 = vector.shape_cast %16 : vector<1x8x32xf32> to vector<8x32xf32>
    %18 = vector.shape_cast %0 : vector<1x8x32xf32> to vector<8x32xf32>
    %cst_13 = arith.constant dense<0.000000e+00> : vector<8x32xf32>
    %19 = tpu.matmul %17, %2, %cst_13 {dimension_numbers = #tpu.dot_dimension_numbers<[1], [0], [0], [1], [0, 0, 1, 1], [], []>} : vector<8x32xf32>, vector<32x32xf32>, vector<8x32xf32> -> vector<8x32xf32>
    %cst_14 = arith.constant dense<0.000000e+00> : vector<8x32xf32>
    %20 = tpu.matmul %18, %3, %cst_14 {dimension_numbers = #tpu.dot_dimension_numbers<[1], [0], [0], [1], [0, 0, 1, 1], [], []>} : vector<8x32xf32>, vector<32x32xf32>, vector<8x32xf32> -> vector<8x32xf32>
    %21 = arith.addf %19, %20 : vector<8x32xf32>
    %22 = math.tanh %21 : vector<8x32xf32>
    %23 = vector.shape_cast %22 : vector<8x32xf32> to vector<1x8x32xf32>
    %c0_15 = arith.constant 0 : index
    %c0_16 = arith.constant 0 : index
    %c0_17 = arith.constant 0 : index
    %24 = vector.load %arg6[%c0_15, %c0_16, %c0_17] : memref<1x8x32xf32, #tpu.memory_space<vmem>>, vector<1x8x32xf32>
    tpu.vector_store %arg6[%c0_15, %c0_16, %c0_17], %23 {strides = array<i32>} : memref<1x8x32xf32, #tpu.memory_space<vmem>>, vector<1x8x32xf32>,
    %c0_18 = arith.constant 0 : index
    %c0_19 = arith.constant 0 : index
    %c0_20 = arith.constant 0 : index
    %25 = vector.load %arg7[%c0_18, %c0_19, %c0_20] : memref<1x8x8xf32, #tpu.memory_space<vmem>>, vector<1x8x8xf32>
    tpu.vector_store %arg7[%c0_18, %c0_19, %c0_20], %15 {strides = array<i32>} : memref<1x8x8xf32, #tpu.memory_space<vmem>>, vector<1x8x8xf32>,
    return
  }
  func.func @transform_0(%arg0: i32, %arg1: i32) -> (i32, i32, i32) {
    %c0_i32 = arith.constant 0 : i32
    %c0_i32_0 = arith.constant 0 : i32
    return %arg0, %arg1, %c0_i32 : i32, i32, i32
  }
  func.func @transform_1(%arg0: i32, %arg1: i32) -> (i32, i32, i32) {
    %c0_i32 = arith.constant 0 : i32
    %c0_i32_0 = arith.constant 0 : i32
    %c0_i32_1 = arith.constant 0 : i32
    return %arg0, %c0_i32, %c0_i32_0 : i32, i32, i32
  }
  func.func @transform_2(%arg0: i32, %arg1: i32) -> (i32, i32) {
    %c0_i32 = arith.constant 0 : i32
    %c0_i32_0 = arith.constant 0 : i32
    %c0_i32_1 = arith.constant 0 : i32
    return %c0_i32, %c0_i32_0 : i32, i32
  }
  func.func @transform_3(%arg0: i32, %arg1: i32) -> (i32, i32) {
    %c0_i32 = arith.constant 0 : i32
    %c0_i32_0 = arith.constant 0 : i32
    %c0_i32_1 = arith.constant 0 : i32
    return %c0_i32, %c0_i32_0 : i32, i32
  }
  func.func @transform_4(%arg0: i32, %arg1: i32) -> (i32, i32, i32) {
    %c0_i32 = arith.constant 0 : i32
    %c0_i32_0 = arith.constant 0 : i32
    return %arg0, %arg1, %c0_i32 : i32, i32, i32
  }
  func.func @transform_5(%arg0: i32, %arg1: i32) -> (i32, i32, i32) {
    %c0_i32 = arith.constant 0 : i32
    %c0_i32_0 = arith.constant 0 : i32
    return %arg0, %arg1, %c0_i32 : i32, i32, i32
  }
}

</mosaic_0001>

<llo_original>
// kernel: attention_forward.1
$region0: #{attention_forward.1}
  #allocation0 [shape = 'u32[]', space=smem, size = 0x4, offset = 0x4, fixed_abs, tag = 'smem constant byte address 0x4 - core index']
  #allocation1 [shape = 'u32[144,128]{1,0:T(1,128)}', space=vmem, size = 0x12000, scoped, tag = 'internal scratch']
  %s0 = inlined_call_operand.vmem [shape: f32[2,8,32], index: 0, kind: input, shape index: {}]
  %s1 = inlined_call_operand.vmem [shape: f32[2,8,32], index: 1, kind: input, shape index: {}]
  %s2 = inlined_call_operand.vmem [shape: f32[32,32], index: 2, kind: input, shape index: {}]
  %s3 = inlined_call_operand.vmem [shape: f32[32,32], index: 3, kind: input, shape index: {}]
  %s4 = inlined_call_operand.hbm [shape: f32[2,8,32], index: 4, kind: output, shape index: {0}]
  %s5 = inlined_call_operand.hbm [shape: f32[2,8,8], index: 5, kind: output, shape index: {1}]
  %6 = xla_tuple %s4, %s5
  %s7 = sld [smem:[#allocation0]]
  $region57: #{attention_forward.1} parent=0
    _
  %s9 = ssub.s32 1, %s7
  %s10 = scalar_select 0, %s9, %s7
  $region1: #{attention_forward.1} parent=0
    #allocation2 [shape = 'u8[8192]{0}', space=vmem, size = 0x2000, scoped, tag = 'output window, operand 0']
    #allocation3 [shape = 's32[2]{0}', space=sflag, size = 0x8, scoped, tag = 'scoped memory for attention_forward.1']
    #allocation4 [shape = 'u8[8192]{0}', space=vmem, size = 0x2000, scoped, tag = 'output window, operand 1']
    #allocation5 [shape = 's32[2]{0}', space=sflag, size = 0x8, scoped, tag = 'scoped memory for attention_forward.1']
    %11 = vsyncpa [#allocation3], 0
    %s12 = scalar_lea.sflag [#allocation3], 1
    %13 = vsyncpa %s12, 0
    %14 = vsyncpa [#allocation5], 0
    %s15 = scalar_lea.sflag [#allocation5], 1
    %16 = vsyncpa %s15, 0
    loop: start=0, step=1, limit=4
    $region2: #{attention_forward.1} parent=1 // loop_pre_header
      _
    $region3: #{attention_forward.1} parent=1 // loop_header
      %s18 = sphi 0, %s22
      %p19 = scmp.ge.s32.totalorder %s18, 4
      %s25 = sphi 0, %s37
      %s26 = sphi 0, %s33
      %s27 = sphi 0, %s25
      %s28 = sphi 0, %s26
      %s29 = sphi 0, %s27
      %s30 = sphi 0, %s28
      %s42 = sphi 0, %s44
      %s45 = sphi 0, %s42
      %s46 = sphi 0, %s45
      %s62 = sphi 0, %s46
      %s68 = sphi 0, %s70
      %s71 = sphi 0, %s68
      %s72 = sphi 0, %s71
      %s88 = sphi 0, %s72
      %s92 = sphi 0, %s92
      %s94 = sphi 0, %s92
      %s95 = sphi 0, %s94
      %s109 = sphi 0, %s95
      %s113 = sphi 0, %s113
      %s115 = sphi 0, %s113
      %s116 = sphi 0, %s115
      %s130 = sphi 0, %s116
      %s138 = sphi 0, %s140
      %s141 = sphi 0, %s138
      %s142 = sphi 0, %s141
      %s158 = sphi 0, %s142
      %s166 = sphi 0, %s168
      %s169 = sphi 0, %s166
      %s170 = sphi 0, %s169
      %s186 = sphi 0, %s170
    $region4: #{attention_forward.1} parent=1 // loop_header_branch
      %21 = sbr.rel (%p19) target = $region8
    $region5: #{attention_forward.1} parent=1 // loop_body
      %s23 = ssub.s32 %s18, 1
      %s24 = ssub.s32 %s18, 2
      %s31 = sadd.s32 1, %s26
      %p32 = scmp.ge.s32.totalorder %s31, 1
      %s33 = scalar_select %p32, 0, %s31
      %s34 = sadd.s32 1, %s25
      %s35 = scalar_select %p32, %s34, %s25
      %p36 = scmp.ge.s32.totalorder %s35, 2
      %s37 = scalar_select %p36, 0, %s35
      %s38 = ssub.s32 %s25, %s37
      %s39 = ssub.s32 %s26, %s33
      %s40 = sor.u32 %s38, %s39
      %p41 = scmp.eq.s32.totalorder %s40, 0
      %s43 = sadd.s32 %s42, 1
      %s44 = scalar_select %p41, %s42, %s43
      %p47 = pneg %p41
      %p48 = scmp.eq.s32.totalorder %s18, 1
      %p49 = por %p47, %p48
      %p50 = scmp.ne.s32.totalorder %s42, %s45
      %p51 = scmp.eq.s32.totalorder %s18, 0
      %p52 = por %p50, %p51
      %p53 = scmp.ne.s32.totalorder %s42, %s45
      %p54 = scmp.eq.s32.totalorder %s23, 1
      %p55 = por %p53, %p54
      %p56 = scmp.ne.s32.totalorder %s45, %s46
      %p57 = scmp.eq.s32.totalorder %s23, 0
      %p58 = por %p56, %p57
      %p59 = scmp.ne.s32.totalorder %s45, %s46
      %p60 = scmp.eq.s32.totalorder %s24, 1
      %p61 = por %p59, %p60
      %p63 = scmp.ne.s32.totalorder %s46, %s62
      %p64 = scmp.eq.s32.totalorder %s24, 0
      %p65 = por %p63, %p64
      %s66 = ssub.s32 %s25, %s37
      %p67 = scmp.eq.s32.totalorder %s66, 0
      %s69 = sadd.s32 %s68, 1
      %s70 = scalar_select %p67, %s68, %s69
      %p73 = pneg %p67
      %p74 = scmp.eq.s32.totalorder %s18, 1
      %p75 = por %p73, %p74
      %p76 = scmp.ne.s32.totalorder %s68, %s71
      %p77 = scmp.eq.s32.totalorder %s18, 0
      %p78 = por %p76, %p77
      %p79 = scmp.ne.s32.totalorder %s68, %s71
      %p80 = scmp.eq.s32.totalorder %s23, 1
      %p81 = por %p79, %p80
      %p82 = scmp.ne.s32.totalorder %s71, %s72
      %p83 = scmp.eq.s32.totalorder %s23, 0
      %p84 = por %p82, %p83
      %p85 = scmp.ne.s32.totalorder %s71, %s72
      %p86 = scmp.eq.s32.totalorder %s24, 1
      %p87 = por %p85, %p86
      %p89 = scmp.ne.s32.totalorder %s72, %s88
      %p90 = scmp.eq.s32.totalorder %s24, 0
      %p91 = por %p89, %p90
      %s93 = sadd.s32 %s92, 1
      %p96 = scmp.eq.s32.totalorder %s18, 1
      %p97 = scmp.ne.s32.totalorder %s92, %s94
      %p98 = scmp.eq.s32.totalorder %s18, 0
      %p99 = por %p97, %p98
      %p100 = scmp.ne.s32.totalorder %s92, %s94
      %p101 = scmp.eq.s32.totalorder %s23, 1
      %p102 = por %p100, %p101
      %p103 = scmp.ne.s32.totalorder %s94, %s95
      %p104 = scmp.eq.s32.totalorder %s23, 0
      %p105 = por %p103, %p104
      %p106 = scmp.ne.s32.totalorder %s94, %s95
      %p107 = scmp.eq.s32.totalorder %s24, 1
      %p108 = por %p106, %p107
      %p110 = scmp.ne.s32.totalorder %s95, %s109
      %p111 = scmp.eq.s32.totalorder %s24, 0
      %p112 = por %p110, %p111
      %s114 = sadd.s32 %s113, 1
      %p117 = scmp.eq.s32.totalorder %s18, 1
      %p118 = scmp.ne.s32.totalorder %s113, %s115
      %p119 = scmp.eq.s32.totalorder %s18, 0
      %p120 = por %p118, %p119
      %p121 = scmp.ne.s32.totalorder %s113, %s115
      %p122 = scmp.eq.s32.totalorder %s23, 1
      %p123 = por %p121, %p122
      %p124 = scmp.ne.s32.totalorder %s115, %s116
      %p125 = scmp.eq.s32.totalorder %s23, 0
      %p126 = por %p124, %p125
      %p127 = scmp.ne.s32.totalorder %s115, %s116
      %p128 = scmp.eq.s32.totalorder %s24, 1
      %p129 = por %p127, %p128
      %p131 = scmp.ne.s32.totalorder %s116, %s130
      %p132 = scmp.eq.s32.totalorder %s24, 0
      %p133 = por %p131, %p132
      %s134 = ssub.s32 %s25, %s37
      %s135 = ssub.s32 %s26, %s33
      %s136 = sor.u32 %s134, %s135
      %p137 = scmp.eq.s32.totalorder %s136, 0
      %s139 = sadd.s32 %s138, 1
      %s140 = scalar_select %p137, %s138, %s139
      %p143 = pneg %p137
      %p144 = scmp.eq.s32.totalorder %s18, 1
      %p145 = por %p143, %p144
      %p146 = scmp.ne.s32.totalorder %s138, %s141
      %p147 = scmp.eq.s32.totalorder %s18, 0
      %p148 = por %p146, %p147
      %p149 = scmp.ne.s32.totalorder %s138, %s141
      %p150 = scmp.eq.s32.totalorder %s23, 1
      %p151 = por %p149, %p150
      %p152 = scmp.ne.s32.totalorder %s141, %s142
      %p153 = scmp.eq.s32.totalorder %s23, 0
      %p154 = por %p152, %p153
      %p155 = scmp.ne.s32.totalorder %s141, %s142
      %p156 = scmp.eq.s32.totalorder %s24, 1
      %p157 = por %p155, %p156
      %p159 = scmp.ne.s32.totalorder %s142, %s158
      %p160 = scmp.eq.s32.totalorder %s24, 0
      %p161 = por %p159, %p160
      %s162 = ssub.s32 %s25, %s37
      %s163 = ssub.s32 %s26, %s33
      %s164 = sor.u32 %s162, %s163
      %p165 = scmp.eq.s32.totalorder %s164, 0
      %s167 = sadd.s32 %s166, 1
      %s168 = scalar_select %p165, %s166, %s167
      %p171 = pneg %p165
      %p172 = scmp.eq.s32.totalorder %s18, 1
      %p173 = por %p171, %p172
      %p174 = scmp.ne.s32.totalorder %s166, %s169
      %p175 = scmp.eq.s32.totalorder %s18, 0
      %p176 = por %p174, %p175
      %p177 = scmp.ne.s32.totalorder %s166, %s169
      %p178 = scmp.eq.s32.totalorder %s23, 1
      %p179 = por %p177, %p178
      %p180 = scmp.ne.s32.totalorder %s169, %s170
      %p181 = scmp.eq.s32.totalorder %s23, 0
      %p182 = por %p180, %p181
      %p183 = scmp.ne.s32.totalorder %s169, %s170
      %p184 = scmp.eq.s32.totalorder %s24, 1
      %p185 = por %p183, %p184
      %p187 = scmp.ne.s32.totalorder %s170, %s186
      %p188 = scmp.eq.s32.totalorder %s24, 0
      %p189 = por %p187, %p188
      %p190 = scmp.le.s32.totalorder 1, %s18
      %p191 = scmp.lt.s32.totalorder %s18, 3
      %p192 = pnand %p190, %p191
      %p193 = pneg %p192
      // Predicated region
      $region9: #{attention_forward.1} parent=5 // pred_check
        _
      $region10: #{attention_forward.1} parent=5 // pred_check_branch
        %195 = sbr.rel (%p192) target = $region12
      $region11: #{attention_forward.1} parent=5 // pred_region
        %s196 = ssub.s32 %s18, 1
        // Predicated region
        $region13: #{attention_forward.1} parent=11 // pred_check
          %p197 = pneg %p105
        $region14: #{attention_forward.1} parent=11 // pred_check_branch
          %199 = sbr.rel (%p197) target = $region16
        $region15: #{attention_forward.1} parent=11 // pred_region
          _
        $region16: #{attention_forward.1} parent=11 // pred_fallthru
          _
        // Predicated region
        $region17: #{attention_forward.1} parent=11 // pred_check
          %p200 = pneg %p126
        $region18: #{attention_forward.1} parent=11 // pred_check_branch
          %202 = sbr.rel (%p200) target = $region20
        $region19: #{attention_forward.1} parent=11 // pred_region
          _
        $region20: #{attention_forward.1} parent=11 // pred_fallthru
          _
      $region12: #{attention_forward.1} parent=5 // pred_fallthru
        _
      %p203 = scmp.lt.s32.totalorder %s18, 2
      // Predicated region
      $region21: #{attention_forward.1} parent=5 // pred_check
        %p204 = pneg %p203
      $region22: #{attention_forward.1} parent=5 // pred_check_branch
        %206 = sbr.rel (%p204) target = $region24
      $region23: #{attention_forward.1} parent=5 // pred_region
        // Predicated region
        $region25: #{attention_forward.1} parent=23 // pred_check
          %p207 = pneg %p52
        $region26: #{attention_forward.1} parent=23 // pred_check_branch
          %209 = sbr.rel (%p207) target = $region28
        $region27: #{attention_forward.1} parent=23 // pred_region
          %p210 = scmp.lt.s32.totalorder %s25, 1
          %s211 = scalar_select %p210, %s25, 1
          %p212 = scmp.lt.s32.totalorder %s26, 0
          %s213 = scalar_select %p212, %s26, 0
          %s214 = sadd.s32 %s213, %s211
          %s215 = smul.addr %s214, 8
          %s216 = scalar_lea.vmem %s0, %s215
        $region28: #{attention_forward.1} parent=23 // pred_fallthru
          _
        // Predicated region
        $region29: #{attention_forward.1} parent=23 // pred_check
          %p217 = pneg %p78
        $region30: #{attention_forward.1} parent=23 // pred_check_branch
          %219 = sbr.rel (%p217) target = $region32
        $region31: #{attention_forward.1} parent=23 // pred_region
          %p220 = scmp.lt.s32.totalorder %s25, 1
          %s221 = scalar_select %p220, %s25, 1
          %s222 = smul.addr %s221, 8
          %s223 = scalar_lea.vmem %s1, %s222
        $region32: #{attention_forward.1} parent=23 // pred_fallthru
          _
      $region24: #{attention_forward.1} parent=5 // pred_fallthru
        _
      %p224 = scmp.le.s32.totalorder 1, %s18
      %p225 = scmp.lt.s32.totalorder %s18, 3
      %p226 = pnand %p224, %p225
      %p227 = pneg %p226
      // Predicated region
      $region33: #{attention_forward.1} parent=5 // pred_check
        _
      $region34: #{attention_forward.1} parent=5 // pred_check_branch
        %229 = sbr.rel (%p226) target = $region36
      $region35: #{attention_forward.1} parent=5 // pred_region
        %s230 = ssub.s32 %s18, 1
        %p231 = scmp.lt.s32.totalorder %s27, 1
        %s232 = scalar_select %p231, %s27, 1
        %p233 = scmp.lt.s32.totalorder %s28, 0
        %s234 = scalar_select %p233, %s28, 0
        %s235 = sadd.s32 %s234, %s232
        %s236 = smul.addr %s235, 8
        %s237 = scalar_lea.vmem %s0, %s236
        %p238 = pneg %p58
        %p239 = pneg %p55
        %p240 = scmp.lt.s32.totalorder %s27, 1
        %s241 = scalar_select %p240, %s27, 1
        %s242 = smul.addr %s241, 8
        %s243 = scalar_lea.vmem %s1, %s242
        %p244 = pneg %p84
        %p245 = pneg %p81
        %p246 = pneg %p105
        %p247 = pneg %p102
        %p248 = pneg %p126
        %p249 = pneg %p123
        %p250 = pneg %p154
        %p251 = pneg %p151
        %s252 = sand.u32 %s141, 1
        %s253 = scalar_lea.sflag [#allocation3], %s252
        %s254 = sand.u32 %s141, 1
        %s255 = smul.addr %s254, 8
        %s256 = scalar_lea.vmem [#allocation2], %s255
        %p257 = pneg %p182
        %p258 = pneg %p179
        %s259 = sand.u32 %s169, 1
        %s260 = scalar_lea.sflag [#allocation5], %s259
        %s261 = sand.u32 %s169, 1
        %s262 = smul.addr %s261, 8
        %s263 = scalar_lea.vmem [#allocation4], %s262
        %p264 = scmp.lt.s32.totalorder %s27, 1
        %s265 = scalar_select %p264, %s27, 1
        %p266 = scmp.lt.s32.totalorder %s28, 0
        %s267 = scalar_select %p266, %s28, 0
        %s268 = sadd.s32 %s267, %s265
        %s269 = smul.addr %s268, 8
        %s270 = scalar_lea.vmem %s0, %s269
        %p271 = scmp.lt.s32.totalorder %s27, 1
        %s272 = scalar_select %p271, %s27, 1
        %s273 = smul.addr %s272, 8
        %s274 = scalar_lea.vmem %s1, %s273
        %v275 = vld [vmem:[%s270] sm:$0xff]
        %v276 = vld [vmem:[%s274] sm:$0xff]
        %v277 = vld [vmem:[%s2] sm:$0xff]
        %v278 = vld [vmem:[%s2 + $0x8] sm:$0xff]
        %v279 = vld [vmem:[%s2 + $0x10] sm:$0xff]
        %v280 = vld [vmem:[%s2 + $0x18] sm:$0xff]
        %v281 = vld [vmem:[%s3] sm:$0xff]
        %v282 = vld [vmem:[%s3 + $0x8] sm:$0xff]
        %v283 = vld [vmem:[%s3 + $0x10] sm:$0xff]
        %v284 = vld [vmem:[%s3 + $0x18] sm:$0xff]
        %vm285 = vcmask 261120
        %v287 = vsel %vm285, %v275, 0
        %v290 = vsel %vm285, %v276, 0
        %292 = vmatprep.subr.mxu0 0.0
        %293 = vmatpush1.xpose.msra.mxu0 %v290
        %294 = vmatprep.subr.mxu0 0.0
        %295 = vmatpush1.xpose.msra.mxu0 0.0
        %296 = vmatprep.subr.mxu0 0.0
        %297 = vmatpush1.xpose.msra.mxu0 0.0
        %298 = vmatprep.subr.mxu0 0.0
        %299 = vmatpush1.xpose.msra.mxu0 0.0
        %300 = vmatprep.subr.mxu0 0.0
        %301 = vmatpush1.xpose.msra.mxu0 0.0
        %302 = vmatprep.subr.mxu0 0.0
        %303 = vmatpush1.xpose.msra.mxu0 0.0
        %304 = vmatprep.subr.mxu0 0.0
        %305 = vmatpush1.xpose.msra.mxu0 0.0
        %306 = vmatprep.subr.mxu0 0.0
        %307 = vmatpush1.xpose.msra.mxu0 0.0
        %308 = vmatprep.subr.mxu0 0.0
        %309 = vmatpush1.xpose.msra.mxu0 0.0
        %310 = vmatprep.subr.mxu0 0.0
        %311 = vmatpush1.xpose.msra.mxu0 0.0
        %312 = vmatprep.subr.mxu0 0.0
        %313 = vmatpush1.xpose.msra.mxu0 0.0
        %314 = vmatprep.subr.mxu0 0.0
        %315 = vmatpush1.xpose.msra.mxu0 0.0
        %316 = vmatprep.subr.mxu0 0.0
        %317 = vmatpush1.xpose.msra.mxu0 0.0
        %318 = vmatprep.subr.mxu0 0.0
        %319 = vmatpush1.xpose.msra.mxu0 0.0
        %320 = vmatprep.subr.mxu0 0.0
        %321 = vmatpush1.xpose.msra.mxu0 0.0
        %322 = vmatprep.subr.mxu0 0.0
        %323 = vmatpush1.xpose.msra.mxu0 0.0
        %324 = vmatprep.subr.mxu0 0.0
        %325 = vmatpush1.xpose.msra.mxu0 0.0
        %326 = vmatprep.subr.mxu0 0.0
        %327 = vmatpush1.xpose.msra.mxu0 0.0
        %328 = vmatprep.subr.mxu0 0.0
        %329 = vmatpush1.xpose.msra.mxu0 0.0
        %330 = vmatprep.subr.mxu0 0.0
        %331 = vmatpush1.xpose.msra.mxu0 0.0
        %332 = vmatprep.subr.mxu0 0.0
        %333 = vmatpush1.xpose.msra.mxu0 0.0
        %334 = vmatprep.subr.mxu0 0.0
        %335 = vmatpush1.xpose.msra.mxu0 0.0
        %336 = vmatprep.subr.mxu0 0.0
        %337 = vmatpush1.xpose.msra.mxu0 0.0
        %338 = vmatprep.subr.mxu0 0.0
        %339 = vmatpush1.xpose.msra.mxu0 0.0
        %340 = vmatprep.subr.mxu0 0.0
        %341 = vmatpush1.xpose.msra.mxu0 0.0
        %342 = vmatprep.subr.mxu0 0.0
        %343 = vmatpush1.xpose.msra.mxu0 0.0
        %344 = vmatprep.subr.mxu0 0.0
        %345 = vmatpush1.xpose.msra.mxu0 0.0
        %346 = vmatprep.subr.mxu0 0.0
        %347 = vmatpush1.xpose.msra.mxu0 0.0
        %348 = vmatprep.subr.mxu0 0.0
        %349 = vmatpush1.xpose.msra.mxu0 0.0
        %350 = vmatprep.subr.mxu0 0.0
        %351 = vmatpush1.xpose.msra.mxu0 0.0
        %352 = vmatprep.subr.mxu0 0.0
        %353 = vmatpush1.xpose.msra.mxu0 0.0
        %354 = vmatprep.subr.mxu0 0.0
        %355 = vmatpush1.xpose.msra.mxu0 0.0
        %356 = vmatprep.mubr.f32.mxu0 0.0
        %357 = vmatmul.mubr.f32.gmra.mrb[0].mxu0 %v287
        %v358 = vpop.f32.mrb[0].mxu0
        %v359 = vadd.f32 0.0, %v358
        %v360 = vpop.f32.mrb[0].mxu0
        %361 = vdwg.mxu0
        %vm362 = vcmask 64512
        %v363 = vsel %vm362, %v359, -inf
        %364 = vmax.xlane.f32.xlu0 %v363
        %v365 = vpop.xlane.xlu0 %364
        %v366 = vsub.f32 %v359, %v365
        %v367 = vmul.f32 %v366, 1.442695
        %v368 = vpow.pop %v367
        %v369 = vsel %vm362, %v368, 0.0
        %370 = vadd.xlane.f32.xlu0 %v369
        %v371 = vpop.xlane.xlu0 %370
        %v372 = vrcp.pop %v371
        %v373 = vmul.f32 1.0, %v372
        %v374 = vmul.f32 %v368, %v373
        %v376 = vsel %vm362, %v374, 0
        %378 = vmatprep.subr.mxu0 0.0
        %379 = vmatpush1.msra.mxu0 %v276
        %380 = vmatprep.subr.mxu0 0.0
        %381 = vmatpush1.msra.mxu0 0.0
        %382 = vmatprep.subr.mxu0 0.0
        %383 = vmatpush1.msra.mxu0 0.0
        %384 = vmatprep.subr.mxu0 0.0
        %385 = vmatpush1.msra.mxu0 0.0
        %386 = vmatprep.subr.mxu0 0.0
        %387 = vmatpush1.msra.mxu0 0.0
        %388 = vmatprep.subr.mxu0 0.0
        %389 = vmatpush1.msra.mxu0 0.0
        %390 = vmatprep.subr.mxu0 0.0
        %391 = vmatpush1.msra.mxu0 0.0
        %392 = vmatprep.subr.mxu0 0.0
        %393 = vmatpush1.msra.mxu0 0.0
        %394 = vmatprep.subr.mxu0 0.0
        %395 = vmatpush1.msra.mxu0 0.0
        %396 = vmatprep.subr.mxu0 0.0
        %397 = vmatpush1.msra.mxu0 0.0
        %398 = vmatprep.subr.mxu0 0.0
        %399 = vmatpush1.msra.mxu0 0.0
        %400 = vmatprep.subr.mxu0 0.0
        %401 = vmatpush1.msra.mxu0 0.0
        %402 = vmatprep.subr.mxu0 0.0
        %403 = vmatpush1.msra.mxu0 0.0
        %404 = vmatprep.subr.mxu0 0.0
        %405 = vmatpush1.msra.mxu0 0.0
        %406 = vmatprep.subr.mxu0 0.0
        %407 = vmatpush1.msra.mxu0 0.0
        %408 = vmatprep.subr.mxu0 0.0
        %409 = vmatpush1.msra.mxu0 0.0
        %410 = vmatprep.subr.mxu0 0.0
        %411 = vmatpush1.msra.mxu0 0.0
        %412 = vmatprep.subr.mxu0 0.0
        %413 = vmatpush1.msra.mxu0 0.0
        %414 = vmatprep.subr.mxu0 0.0
        %415 = vmatpush1.msra.mxu0 0.0
        %416 = vmatprep.subr.mxu0 0.0
        %417 = vmatpush1.msra.mxu0 0.0
        %418 = vmatprep.subr.mxu0 0.0
        %419 = vmatpush1.msra.mxu0 0.0
        %420 = vmatprep.subr.mxu0 0.0
        %421 = vmatpush1.msra.mxu0 0.0
        %422 = vmatprep.subr.mxu0 0.0
        %423 = vmatpush1.msra.mxu0 0.0
        %424 = vmatprep.subr.mxu0 0.0
        %425 = vmatpush1.msra.mxu0 0.0
        %426 = vmatprep.subr.mxu0 0.0
        %427 = vmatpush1.msra.mxu0 0.0
        %428 = vmatprep.subr.mxu0 0.0
        %429 = vmatpush1.msra.mxu0 0.0
        %430 = vmatprep.subr.mxu0 0.0
        %431 = vmatpush1.msra.mxu0 0.0
        %432 = vmatprep.subr.mxu0 0.0
        %433 = vmatpush1.msra.mxu0 0.0
        %434 = vmatprep.subr.mxu0 0.0
        %435 = vmatpush1.msra.mxu0 0.0
        %436 = vmatprep.subr.mxu0 0.0
        %437 = vmatpush1.msra.mxu0 0.0
        %438 = vmatprep.subr.mxu0 0.0
        %439 = vmatpush1.msra.mxu0 0.0
        %440 = vmatprep.subr.mxu0 0.0
        %441 = vmatpush1.msra.mxu0 0.0
        %442 = vmatprep.mubr.f32.mxu0 0.0
        %443 = vmatmul.mubr.f32.gmra.mrb[0].mxu0 %v376
        %v444 = vpop.f32.mrb[0].mxu0
        %v445 = vadd.f32 0.0, %v444
        %v446 = vpop.f32.mrb[0].mxu0
        %447 = vdwg.mxu0
        %448 = vmatprep.subr.mxu0 0.0
        %449 = vmatpush1.msra.mxu0 %v281
        %450 = vmatprep.subr.mxu0 0.0
        %451 = vmatpush1.msra.mxu0 %v282
        %452 = vmatprep.subr.mxu0 0.0
        %453 = vmatpush1.msra.mxu0 %v283
        %454 = vmatprep.subr.mxu0 0.0
        %455 = vmatpush1.msra.mxu0 %v284
        %456 = vmatprep.subr.mxu0 0.0
        %457 = vmatpush1.msra.mxu0 0.0
        %458 = vmatprep.subr.mxu0 0.0
        %459 = vmatpush1.msra.mxu0 0.0
        %460 = vmatprep.subr.mxu0 0.0
        %461 = vmatpush1.msra.mxu0 0.0
        %462 = vmatprep.subr.mxu0 0.0
        %463 = vmatpush1.msra.mxu0 0.0
        %464 = vmatprep.subr.mxu0 0.0
        %465 = vmatpush1.msra.mxu0 0.0
        %466 = vmatprep.subr.mxu0 0.0
        %467 = vmatpush1.msra.mxu0 0.0
        %468 = vmatprep.subr.mxu0 0.0
        %469 = vmatpush1.msra.mxu0 0.0
        %470 = vmatprep.subr.mxu0 0.0
        %471 = vmatpush1.msra.mxu0 0.0
        %472 = vmatprep.subr.mxu0 0.0
        %473 = vmatpush1.msra.mxu0 0.0
        %474 = vmatprep.subr.mxu0 0.0
        %475 = vmatpush1.msra.mxu0 0.0
        %476 = vmatprep.subr.mxu0 0.0
        %477 = vmatpush1.msra.mxu0 0.0
        %478 = vmatprep.subr.mxu0 0.0
        %479 = vmatpush1.msra.mxu0 0.0
        %480 = vmatprep.subr.mxu0 0.0
        %481 = vmatpush1.msra.mxu0 0.0
        %482 = vmatprep.subr.mxu0 0.0
        %483 = vmatpush1.msra.mxu0 0.0
        %484 = vmatprep.subr.mxu0 0.0
        %485 = vmatpush1.msra.mxu0 0.0
        %486 = vmatprep.subr.mxu0 0.0
        %487 = vmatpush1.msra.mxu0 0.0
        %488 = vmatprep.subr.mxu0 0.0
        %489 = vmatpush1.msra.mxu0 0.0
        %490 = vmatprep.subr.mxu0 0.0
        %491 = vmatpush1.msra.mxu0 0.0
        %492 = vmatprep.subr.mxu0 0.0
        %493 = vmatpush1.msra.mxu0 0.0
        %494 = vmatprep.subr.mxu0 0.0
        %495 = vmatpush1.msra.mxu0 0.0
        %496 = vmatprep.subr.mxu0 0.0
        %497 = vmatpush1.msra.mxu0 0.0
        %498 = vmatprep.subr.mxu0 0.0
        %499 = vmatpush1.msra.mxu0 0.0
        %500 = vmatprep.subr.mxu0 0.0
        %501 = vmatpush1.msra.mxu0 0.0
        %502 = vmatprep.subr.mxu0 0.0
        %503 = vmatpush1.msra.mxu0 0.0
        %504 = vmatprep.subr.mxu0 0.0
        %505 = vmatpush1.msra.mxu0 0.0
        %506 = vmatprep.subr.mxu0 0.0
        %507 = vmatpush1.msra.mxu0 0.0
        %508 = vmatprep.subr.mxu0 0.0
        %509 = vmatpush1.msra.mxu0 0.0
        %510 = vmatprep.subr.mxu0 0.0
        %511 = vmatpush1.msra.mxu0 0.0
        %512 = vmatprep.mubr.f32.mxu0 0.0
        %513 = vmatmul.mubr.f32.gmra.mrb[0].mxu0 %v287
        %v514 = vpop.f32.mrb[0].mxu0
        %v515 = vadd.f32 0.0, %v514
        %v516 = vpop.f32.mrb[0].mxu0
        %517 = vdwg.mxu0
        %v519 = vsel %vm285, %v445, 0
        %521 = vmatprep.subr.mxu0 0.0
        %522 = vmatpush1.msra.mxu0 %v277
        %523 = vmatprep.subr.mxu0 0.0
        %524 = vmatpush1.msra.mxu0 %v278
        %525 = vmatprep.subr.mxu0 0.0
        %526 = vmatpush1.msra.mxu0 %v279
        %527 = vmatprep.subr.mxu0 0.0
        %528 = vmatpush1.msra.mxu0 %v280
        %529 = vmatprep.subr.mxu0 0.0
        %530 = vmatpush1.msra.mxu0 0.0
        %531 = vmatprep.subr.mxu0 0.0
        %532 = vmatpush1.msra.mxu0 0.0
        %533 = vmatprep.subr.mxu0 0.0
        %534 = vmatpush1.msra.mxu0 0.0
        %535 = vmatprep.subr.mxu0 0.0
        %536 = vmatpush1.msra.mxu0 0.0
        %537 = vmatprep.subr.mxu0 0.0
        %538 = vmatpush1.msra.mxu0 0.0
        %539 = vmatprep.subr.mxu0 0.0
        %540 = vmatpush1.msra.mxu0 0.0
        %541 = vmatprep.subr.mxu0 0.0
        %542 = vmatpush1.msra.mxu0 0.0
        %543 = vmatprep.subr.mxu0 0.0
        %544 = vmatpush1.msra.mxu0 0.0
        %545 = vmatprep.subr.mxu0 0.0
        %546 = vmatpush1.msra.mxu0 0.0
        %547 = vmatprep.subr.mxu0 0.0
        %548 = vmatpush1.msra.mxu0 0.0
        %549 = vmatprep.subr.mxu0 0.0
        %550 = vmatpush1.msra.mxu0 0.0
        %551 = vmatprep.subr.mxu0 0.0
        %552 = vmatpush1.msra.mxu0 0.0
        %553 = vmatprep.subr.mxu0 0.0
        %554 = vmatpush1.msra.mxu0 0.0
        %555 = vmatprep.subr.mxu0 0.0
        %556 = vmatpush1.msra.mxu0 0.0
        %557 = vmatprep.subr.mxu0 0.0
        %558 = vmatpush1.msra.mxu0 0.0
        %559 = vmatprep.subr.mxu0 0.0
        %560 = vmatpush1.msra.mxu0 0.0
        %561 = vmatprep.subr.mxu0 0.0
        %562 = vmatpush1.msra.mxu0 0.0
        %563 = vmatprep.subr.mxu0 0.0
        %564 = vmatpush1.msra.mxu0 0.0
        %565 = vmatprep.subr.mxu0 0.0
        %566 = vmatpush1.msra.mxu0 0.0
        %567 = vmatprep.subr.mxu0 0.0
        %568 = vmatpush1.msra.mxu0 0.0
        %569 = vmatprep.subr.mxu0 0.0
        %570 = vmatpush1.msra.mxu0 0.0
        %571 = vmatprep.subr.mxu0 0.0
        %572 = vmatpush1.msra.mxu0 0.0
        %573 = vmatprep.subr.mxu0 0.0
        %574 = vmatpush1.msra.mxu0 0.0
        %575 = vmatprep.subr.mxu0 0.0
        %576 = vmatpush1.msra.mxu0 0.0
        %577 = vmatprep.subr.mxu0 0.0
        %578 = vmatpush1.msra.mxu0 0.0
        %579 = vmatprep.subr.mxu0 0.0
        %580 = vmatpush1.msra.mxu0 0.0
        %581 = vmatprep.subr.mxu0 0.0
        %582 = vmatpush1.msra.mxu0 0.0
        %583 = vmatprep.subr.mxu0 0.0
        %584 = vmatpush1.msra.mxu0 0.0
        %585 = vmatprep.mubr.f32.mxu0 0.0
        %586 = vmatmul.mubr.f32.gmra.mrb[0].mxu0 %v519
        %v587 = vpop.f32.mrb[0].mxu0
        %v588 = vadd.f32 %v515, %v587
        %v589 = vpop.f32.mrb[0].mxu0
        %590 = vdwg.mxu0
        %v591 = vtanh.pop %v588
        %592 = vst.msk [vmem:[%s256] sm:$0xff] %vm285, %v591
        %593 = vst.msk [vmem:[%s263] sm:$0xff] %vm362, %v374
        %s594 = sand.u32 %s141, 1
        %s595 = scalar_lea.sflag [#allocation3], %s594
        %s596 = sand.u32 %s141, 1
        %s597 = smul.addr %s596, 8
        %s598 = scalar_lea.vmem [#allocation2], %s597
        %s599 = sand.u32 %s169, 1
        %s600 = scalar_lea.sflag [#allocation5], %s599
        %s601 = sand.u32 %s169, 1
        %s602 = smul.addr %s601, 8
        %s603 = scalar_lea.vmem [#allocation4], %s602
        // Predicated region
        $region37: #{attention_forward.1} parent=35 // pred_check
          %p604 = pneg %p151
        $region38: #{attention_forward.1} parent=35 // pred_check_branch
          %606 = sbr.rel (%p604) target = $region40
        $region39: #{attention_forward.1} parent=35 // pred_region
          %s608 = ssub.s32 128, 128
          %609 = vsyncadd %s595, %s608
          %s610 = sadd.s32 %s28, %s27
          %s611 = smul.addr %s610, 128
          %s612 = scalar_lea.hbm %s4, %s611
          %s614 = sshll.u32 %s598, 4
          %s615 = int_to_ptr.vmem [resolvable:$true] %s614
          %617 = dma.vmem_to_hbm [thread:$0]  %s615, 128, %s612, %s595
        $region40: #{attention_forward.1} parent=35 // pred_fallthru
          _
        // Predicated region
        $region41: #{attention_forward.1} parent=35 // pred_check
          %p618 = pneg %p179
        $region42: #{attention_forward.1} parent=35 // pred_check_branch
          %620 = sbr.rel (%p618) target = $region44
        $region43: #{attention_forward.1} parent=35 // pred_region
          %s622 = ssub.s32 128, 128
          %623 = vsyncadd %s600, %s622
          %s624 = sadd.s32 %s28, %s27
          %s625 = smul.addr %s624, 128
          %s626 = scalar_lea.hbm %s5, %s625
          %s628 = sshll.u32 %s603, 4
          %s629 = int_to_ptr.vmem [resolvable:$true] %s628
          %631 = dma.vmem_to_hbm [thread:$0]  %s629, 128, %s626, %s600
        $region44: #{attention_forward.1} parent=35 // pred_fallthru
          _
      $region36: #{attention_forward.1} parent=5 // pred_fallthru
        _
      %p632 = scmp.le.s32.totalorder 2, %s18
      // Predicated region
      $region45: #{attention_forward.1} parent=5 // pred_check
        %p633 = pneg %p632
      $region46: #{attention_forward.1} parent=5 // pred_check_branch
        %635 = sbr.rel (%p633) target = $region48
      $region47: #{attention_forward.1} parent=5 // pred_region
        %s636 = ssub.s32 %s18, 2
        // Predicated region
        $region49: #{attention_forward.1} parent=47 // pred_check
          %p637 = pneg %p157
        $region50: #{attention_forward.1} parent=47 // pred_check_branch
          %639 = sbr.rel (%p637) target = $region52
        $region51: #{attention_forward.1} parent=47 // pred_region
          %s640 = sand.u32 %s142, 1
          %s641 = scalar_lea.sflag [#allocation3], %s640
          %s642 = sand.u32 %s142, 1
          %s643 = smul.addr %s642, 8
          %s644 = scalar_lea.vmem [#allocation2], %s643
          %645 = dma.done %s641, 128
        $region52: #{attention_forward.1} parent=47 // pred_fallthru
          _
        // Predicated region
        $region53: #{attention_forward.1} parent=47 // pred_check
          %p646 = pneg %p185
        $region54: #{attention_forward.1} parent=47 // pred_check_branch
          %648 = sbr.rel (%p646) target = $region56
        $region55: #{attention_forward.1} parent=47 // pred_region
          %s649 = sand.u32 %s170, 1
          %s650 = scalar_lea.sflag [#allocation5], %s649
          %s651 = sand.u32 %s170, 1
          %s652 = smul.addr %s651, 8
          %s653 = scalar_lea.vmem [#allocation4], %s652
          %654 = dma.done %s650, 128
        $region56: #{attention_forward.1} parent=47 // pred_fallthru
          _
      $region48: #{attention_forward.1} parent=5 // pred_fallthru
        _
    $region6: #{attention_forward.1} parent=1 // loop_footer
      %s22 = sadd.s32 1, %s18
    $region7: #{attention_forward.1} parent=1 // loop_footer_branch
      %17 = sbr.rel target = $region3
    $region8: #{attention_forward.1} parent=1 // loop_exit
      _
    %655 = vsyncpa [#allocation3], 1
    %s656 = scalar_lea.sflag [#allocation3], 1
    %657 = vsyncpa %s656, 1
    %658 = vsyncpa [#allocation5], 1
    %s659 = scalar_lea.sflag [#allocation5], 1
    %660 = vsyncpa %s659, 1

</llo_original>
